<compile_context>
chip_gen: v7x
topology: tpu7x:2x2x1
jax: 0.10.0
libtpu: 0.0.40
codegen_flags: <defaults>
</compile_context>

<pallas_src>
import functools

import jax
import jax.numpy as jnp
from jax.experimental import pallas as pl
from jax.experimental.pallas import tpu as pltpu

LEAKY_SLOPE = 0.01  # nn.LeakyReLU default negative_slope
BN_EPS = 1e-5       # nn.BatchNorm1d default eps
LANES = 128


def _round_up(n, m):
    return ((n + m - 1) // m) * m


def _housenet_kernel(num_layers, widths, x_ref, aff_ref, w_in_ref, *rest):
    """Fused forward pass on one batch tile.

    rest = (w_hidden_0 .. w_hidden_{num_layers-1}, w_out, out_ref)
    Weights are bf16 with zero-padded rows/columns (all padded widths are multiples
    of 128).  aff_ref is one f32 slab:
      rows [0 .. num_layers+1]            : bias (input, hidden 0..L-1, output)
      rows [num_layers+2 .. 2L+1]         : eval-BN scale for hidden layer 0..L-1
    Accumulation and the whole elementwise epilogue are f32 (v5e VPU has no bf16).
    """
    w_hid = rest[:num_layers]
    w_out_ref = rest[num_layers]
    out_ref = rest[num_layers + 1]

    def row(i, w):
        # w is a multiple of 128 -> lane-aligned, unmasked vreg loads.
        return aff_ref[i:i + 1, 0:w]

    # input_layer: plain Linear (no BN / activation in the reference module)
    h = jnp.dot(x_ref[...], w_in_ref[...],
                preferred_element_type=jnp.float32) + row(0, widths[0])

    # hidden layers: Linear -> eval-BN (scale/shift in f32 epilogue) -> LeakyReLU
    #                -> Dropout (identity in eval mode)
    for i in range(num_layers):
        y = jnp.dot(h.astype(jnp.bfloat16), w_hid[i][...],
                    preferred_element_type=jnp.float32)
        y = y * row(num_layers + 2 + i, widths[1 + i]) + row(1 + i, widths[1 + i])
        h = jnp.where(y > 0, y, LEAKY_SLOPE * y)
        # TODO(synk): training-mode dropout (pltpu.prng_random_bits mask) not emitted.

    # output_layer: padded columns are zero -> lane-dense store; stored as bf16.
    out = jnp.dot(h.astype(jnp.bfloat16), w_out_ref[...],
                  preferred_element_type=jnp.float32) + row(1 + num_layers, widths[-1])
    out_ref[...] = out.astype(out_ref.dtype)


def pack_params(raw, num_layers):
    """Pad all feature widths to multiples of 128, keep weights bf16 (unscaled),
    pack biases (eval-BN folded, f32) and BN scales (f32) into one slab."""
    hidden_dim = raw["w_in"].shape[1]
    out_size = raw["w_out"].shape[1]

    feats = [hidden_dim] + [int(hidden_dim / 2 ** (i + 1)) for i in range(num_layers)] + [out_size]
    padded = [_round_up(max(f, LANES), LANES) for f in feats]
    slab_w = max(padded)

    def pad2(w, rows, cols):
        return jnp.zeros((rows, cols), jnp.float32).at[:w.shape[0], :w.shape[1]].set(w)

    aff = jnp.zeros((2 * num_layers + 2, slab_w), jnp.float32)

    # input layer
    w_in = pad2(raw["w_in"], raw["w_in"].shape[0], padded[0]).astype(jnp.bfloat16)
    aff = aff.at[0, :hidden_dim].set(raw["b_in"].reshape(-1))

    # hidden layers: bias row = b*scale + shift (f32), scale row = eval-BN scale (f32)
    w_hidden = []
    for i in range(num_layers):
        lp = raw["hidden"][i]
        out_f = lp["w"].shape[1]
        w_hidden.append(pad2(lp["w"], padded[i], padded[i + 1]).astype(jnp.bfloat16))
        scale = lp["bn_scale"].reshape(-1)
        shift = lp["bn_shift"].reshape(-1)
        aff = aff.at[1 + i, :out_f].set(lp["b"].reshape(-1) * scale + shift)
        aff = aff.at[num_layers + 2 + i, :out_f].set(scale)

    # output layer
    w_out = pad2(raw["w_out"], padded[num_layers], padded[num_layers + 1]).astype(jnp.bfloat16)
    aff = aff.at[1 + num_layers, :out_size].set(raw["b_out"].reshape(-1))

    return {
        "w_in": w_in,
        "w_hidden": w_hidden,
        "w_out": w_out,
        "aff": aff,
        "padded_widths": tuple(int(w) for w in padded),
        "output_size": out_size,
    }


def _choose_batch_tile(padded_batch, max_block_batch):
    """Power-of-two tile (>=16 rows, bf16 sublane packing); balances pad waste against
    per-step overhead and penalizes single-step grids (idles one v7x TensorCore)."""
    best_tb, best_cost = 16, None
    tb = 16
    while tb <= max(16, max_block_batch):
        total = _round_up(padded_batch, tb)
        steps = total // tb
        cost = total + 32 * steps          # rows processed + ~0.35us per grid step
        if steps == 1:
            cost += total // 2             # one of v7x's two TCs would sit idle
        if best_cost is None or cost < best_cost:
            best_cost, best_tb = cost, tb
        tb *= 2
    return best_tb


def housenet_forward(x, packed, num_layers, *, max_block_batch=1024):
    batch, in_f = x.shape
    widths = packed["padded_widths"]
    out_pad = widths[-1]
    out_size = packed["output_size"]

    # Batch tiling: pad to a multiple of 16 (bf16 packs 16 rows per vreg), then pick
    # a tile that minimizes pad waste while preferring >=2 grid steps.
    padded_batch = _round_up(batch, 16)
    tb = _choose_batch_tile(padded_batch, max_block_batch)
    padded_batch = _round_up(padded_batch, tb)
    grid = (padded_batch // tb,)

    x_p = x
    if padded_batch != batch:
        x_p = jnp.pad(x, ((0, padded_batch - batch), (0, 0)))
    x_p = x_p.astype(jnp.bfloat16)   # halve x HBM traffic; accumulation stays f32

    aff = packed["aff"]
    w_in = packed["w_in"]
    w_hidden = packed["w_hidden"]
    w_out = packed["w_out"]

    weight_bytes = (int(w_in.size) + sum(int(w.size) for w in w_hidden)
                    + int(w_out.size)) * 2 + int(aff.size) * 4
    io_tile_bytes = tb * in_f * 2 + tb * out_pad * 2     # one x tile + one bf16 out tile

    mac = in_f * widths[0] + sum(widths[i] * widths[i + 1] for i in range(len(widths) - 1))
    cost = pl.CostEstimate(
        flops=int(2 * padded_batch * mac),
        transcendentals=0,
        bytes_accessed=int(padded_batch * in_f * 2 + padded_batch * out_pad * 2
                           + weight_bytes),
    )

    kernel = functools.partial(_housenet_kernel, num_layers, widths)

    def run(single_buffer):
        def resident(shape):
            # Same block every grid step -> stays VMEM-resident, no re-fetch per tile.
            if single_buffer:
                return pl.BlockSpec(shape, lambda i: (0, 0),
                                    pipeline_mode=pl.Buffered(1))
            return pl.BlockSpec(shape, lambda i: (0, 0))

        in_specs = (
            [pl.BlockSpec((tb, in_f), lambda i: (i, 0)),   # x: batch-tiled, pipelined
             resident(aff.shape),                           # packed biases + BN scales
             resident(w_in.shape)]
            + [resident(w.shape) for w in w_hidden]
            + [resident(w_out.shape)]
        )

        buf_mult = 1 if single_buffer else 2
        need = weight_bytes * buf_mult + 2 * io_tile_bytes
        vmem_limit = int(min(48 * 1024 * 1024, max(4 * 1024 * 1024, 2 * need)))

        return pl.pallas_call(
            kernel,
            out_shape=jax.ShapeDtypeStruct((padded_batch, out_pad), jnp.bfloat16),
            grid=grid,
            in_specs=in_specs,
            out_specs=pl.BlockSpec((tb, out_pad), lambda i: (i, 0)),
            compiler_params=pltpu.CompilerParams(
                dimension_semantics=("parallel",),  # shard batch tiles across v7x's 2 TCs
                vmem_limit_bytes=vmem_limit,
            ),
            cost_estimate=cost,
        )(x_p, aff, w_in, *w_hidden, w_out)

    try:
        out = run(True)          # single-buffer the resident weights (v7x VMEM headroom)
    except Exception:
        out = run(False)         # fallback: default double-buffering if Buffered(1) unsupported

    return out[:batch, :out_size].astype(jnp.float32)


def init_params(key, input_size, hidden_dim, num_layers, output_size):
    """Deterministic raw parameters matching HouseNet.__init__ shapes (f32)."""
    keys = jax.random.split(key, 4 + 4 * num_layers)
    ki = iter(keys)

    def linear(in_f, out_f):
        w = jax.random.normal(next(ki), (in_f, out_f), jnp.float32) * 0.1
        b = jax.random.normal(next(ki), (1, out_f), jnp.float32) * 0.01
        return w, b

    w_in, b_in = linear(input_size, hidden_dim)

    hidden = []
    for i in range(num_layers):
        in_f = int(hidden_dim / 2 ** i)
        out_f = int(hidden_dim / 2 ** (i + 1))
        w, b = linear(in_f, out_f)
        gamma = 1.0 + 0.1 * jax.random.normal(next(ki), (1, out_f), jnp.float32)
        beta = 0.05 * jax.random.normal(next(ki), (1, out_f), jnp.float32)
        running_mean = jnp.zeros((1, out_f), jnp.float32)
        running_var = jnp.ones((1, out_f), jnp.float32)
        bn_scale = gamma / jnp.sqrt(running_var + BN_EPS)
        bn_shift = beta - running_mean * bn_scale
        hidden.append({"w": w, "b": b, "bn_scale": bn_scale, "bn_shift": bn_shift})

    w_out, b_out = linear(int(hidden_dim / 2 ** num_layers), output_size)

    return {"w_in": w_in, "b_in": b_in, "hidden": hidden,
            "w_out": w_out, "b_out": b_out}


def reference_forward(x, params, num_layers):
    """Pure-JAX f32 reference with PyTorch eval-mode semantics."""
    h = x @ params["w_in"] + params["b_in"]
    for i in range(num_layers):
        lp = params["hidden"][i]
        y = h @ lp["w"] + lp["b"]
        y = y * lp["bn_scale"] + lp["bn_shift"]
        h = jnp.where(y > 0, y, LEAKY_SLOPE * y)
    return h @ params["w_out"] + params["b_out"]


if __name__ == "__main__":
    input_size, hidden_dim, num_layers, output_size = 16, 32, 2, 1
    batch = 8

    key = jax.random.PRNGKey(0)
    pkey, xkey = jax.random.split(key)
    raw_params = init_params(pkey, input_size, hidden_dim, num_layers, output_size)
    packed_params = pack_params(raw_params, num_layers)
    x = jax.random.normal(xkey, (batch, input_size), jnp.float32)

    out = housenet_forward(x, packed_params, num_layers)
    out = jax.block_until_ready(out)

    ref = reference_forward(x, raw_params, num_layers)
    assert out.shape == (batch, output_size)
    # bf16 weights/x/output (f32 accumulation + f32 BN/LeakyReLU epilogue) vs f32 reference.
    assert jnp.allclose(out, ref, atol=5e-2, rtol=5e-2), "mismatch vs JAX reference"

    print("KERNEL_OK")
</pallas_src>

<mosaic_0001>
module attributes {stable_mosaic.version = 11 : i64} {
  func.func @_housenet_kernel(%arg0: i32, %arg1: memref<16x16xbf16, #tpu.memory_space<vmem>>, %arg2: memref<6x128xf32, #tpu.memory_space<vmem>>, %arg3: memref<16x128xbf16, #tpu.memory_space<vmem>>, %arg4: memref<128x128xbf16, #tpu.memory_space<vmem>>, %arg5: memref<128x128xbf16, #tpu.memory_space<vmem>>, %arg6: memref<128x128xbf16, #tpu.memory_space<vmem>>, %arg7: memref<16x128xbf16, #tpu.memory_space<vmem>>) attributes {dimension_semantics = [#tpu.dimension_semantics<parallel>], iteration_bounds = array<i64: 1>, scalar_prefetch = 0 : i64, scratch_operands = 0 : i64, tpu.core_type = #tpu.core_type<tc>, window_params = [{transform_indices = @transform_0, window_bounds = array<i64: 16, 16>}, {pipeline_mode = #tpu.pipeline_mode<synchronous>, transform_indices = @transform_1, window_bounds = array<i64: 6, 128>}, {pipeline_mode = #tpu.pipeline_mode<synchronous>, transform_indices = @transform_2, window_bounds = array<i64: 16, 128>}, {pipeline_mode = #tpu.pipeline_mode<synchronous>, transform_indices = @transform_3, window_bounds = array<i64: 128, 128>}, {pipeline_mode = #tpu.pipeline_mode<synchronous>, transform_indices = @transform_4, window_bounds = array<i64: 128, 128>}, {pipeline_mode = #tpu.pipeline_mode<synchronous>, transform_indices = @transform_5, window_bounds = array<i64: 128, 128>}, {transform_indices = @transform_6, window_bounds = array<i64: 16, 128>}]} {
    %c0 = arith.constant 0 : index
    %c0_0 = arith.constant 0 : index
    %0 = vector.load %arg1[%c0, %c0_0] : memref<16x16xbf16, #tpu.memory_space<vmem>>, vector<16x16xbf16>
    %c0_1 = arith.constant 0 : index
    %c0_2 = arith.constant 0 : index
    %1 = vector.load %arg3[%c0_1, %c0_2] : memref<16x128xbf16, #tpu.memory_space<vmem>>, vector<16x128xbf16>
    %cst = arith.constant dense<0.000000e+00> : vector<16x128xf32>
    %2 = tpu.matmul %0, %1, %cst {dimension_numbers = #tpu.dot_dimension_numbers<[1], [0], [0], [1], [0, 0, 1, 1], [], []>} : vector<16x16xbf16>, vector<16x128xbf16>, vector<16x128xf32> -> vector<16x128xf32>
    %c0_3 = arith.constant 0 : index
    %c0_4 = arith.constant 0 : index
    %3 = vector.load %arg2[%c0_3, %c0_4] : memref<6x128xf32, #tpu.memory_space<vmem>>, vector<1x128xf32>
    %4 = vector.broadcast %3 : vector<1x128xf32> to vector<16x128xf32>
    %5 = arith.addf %2, %4 : vector<16x128xf32>
    %6 = arith.truncf %5 : vector<16x128xf32> to vector<16x128xbf16>
    %c0_5 = arith.constant 0 : index
    %c0_6 = arith.constant 0 : index
    %7 = vector.load %arg4[%c0_5, %c0_6] : memref<128x128xbf16, #tpu.memory_space<vmem>>, vector<128x128xbf16>
    %cst_7 = arith.constant dense<0.000000e+00> : vector<16x128xf32>
    %8 = tpu.matmul %6, %7, %cst_7 {dimension_numbers = #tpu.dot_dimension_numbers<[1], [0], [0], [1], [0, 0, 1, 1], [], []>} : vector<16x128xbf16>, vector<128x128xbf16>, vector<16x128xf32> -> vector<16x128xf32>
    %c4 = arith.constant 4 : index
    %c0_8 = arith.constant 0 : index
    %9 = vector.load %arg2[%c4, %c0_8] : memref<6x128xf32, #tpu.memory_space<vmem>>, vector<1x128xf32>
    %10 = vector.broadcast %9 : vector<1x128xf32> to vector<16x128xf32>
    %11 = arith.mulf %8, %10 : vector<16x128xf32>
    %c1 = arith.constant 1 : index
    %c0_9 = arith.constant 0 : index
    %12 = vector.load %arg2[%c1, %c0_9] : memref<6x128xf32, #tpu.memory_space<vmem>>, vector<1x128xf32>
    %13 = vector.broadcast %12 : vector<1x128xf32> to vector<16x128xf32>
    %14 = arith.addf %11, %13 : vector<16x128xf32>
    %cst_10 = arith.constant 0.000000e+00 : f32
    %15 = vector.broadcast %cst_10 : f32 to vector<16x128xf32>
    %16 = arith.cmpf ogt, %14, %15 : vector<16x128xf32>
    %cst_11 = arith.constant 0.00999999977 : f32
    %17 = vector.broadcast %cst_11 : f32 to vector<16x128xf32>
    %18 = arith.mulf %17, %14 : vector<16x128xf32>
    %19 = arith.select %16, %14, %18 : vector<16x128xi1>, vector<16x128xf32>
    %20 = arith.truncf %19 : vector<16x128xf32> to vector<16x128xbf16>
    %c0_12 = arith.constant 0 : index
    %c0_13 = arith.constant 0 : index
    %21 = vector.load %arg5[%c0_12, %c0_13] : memref<128x128xbf16, #tpu.memory_space<vmem>>, vector<128x128xbf16>
    %cst_14 = arith.constant dense<0.000000e+00> : vector<16x128xf32>
    %22 = tpu.matmul %20, %21, %cst_14 {dimension_numbers = #tpu.dot_dimension_numbers<[1], [0], [0], [1], [0, 0, 1, 1], [], []>} : vector<16x128xbf16>, vector<128x128xbf16>, vector<16x128xf32> -> vector<16x128xf32>
    %c5 = arith.constant 5 : index
    %c0_15 = arith.constant 0 : index
    %23 = vector.load %arg2[%c5, %c0_15] : memref<6x128xf32, #tpu.memory_space<vmem>>, vector<1x128xf32>
    %24 = vector.broadcast %23 : vector<1x128xf32> to vector<16x128xf32>
    %25 = arith.mulf %22, %24 : vector<16x128xf32>
    %c2 = arith.constant 2 : index
    %c0_16 = arith.constant 0 : index
    %26 = vector.load %arg2[%c2, %c0_16] : memref<6x128xf32, #tpu.memory_space<vmem>>, vector<1x128xf32>
    %27 = vector.broadcast %26 : vector<1x128xf32> to vector<16x128xf32>
    %28 = arith.addf %25, %27 : vector<16x128xf32>
    %cst_17 = arith.constant 0.000000e+00 : f32
    %29 = vector.broadcast %cst_17 : f32 to vector<16x128xf32>
    %30 = arith.cmpf ogt, %28, %29 : vector<16x128xf32>
    %cst_18 = arith.constant 0.00999999977 : f32
    %31 = vector.broadcast %cst_18 : f32 to vector<16x128xf32>
    %32 = arith.mulf %31, %28 : vector<16x128xf32>
    %33 = arith.select %30, %28, %32 : vector<16x128xi1>, vector<16x128xf32>
    %34 = arith.truncf %33 : vector<16x128xf32> to vector<16x128xbf16>
    %c0_19 = arith.constant 0 : index
    %c0_20 = arith.constant 0 : index
    %35 = vector.load %arg6[%c0_19, %c0_20] : memref<128x128xbf16, #tpu.memory_space<vmem>>, vector<128x128xbf16>
    %cst_21 = arith.constant dense<0.000000e+00> : vector<16x128xf32>
    %36 = tpu.matmul %34, %35, %cst_21 {dimension_numbers = #tpu.dot_dimension_numbers<[1], [0], [0], [1], [0, 0, 1, 1], [], []>} : vector<16x128xbf16>, vector<128x128xbf16>, vector<16x128xf32> -> vector<16x128xf32>
    %c3 = arith.constant 3 : index
    %c0_22 = arith.constant 0 : index
    %37 = vector.load %arg2[%c3, %c0_22] : memref<6x128xf32, #tpu.memory_space<vmem>>, vector<1x128xf32>
    %38 = vector.broadcast %37 : vector<1x128xf32> to vector<16x128xf32>
    %39 = arith.addf %36, %38 : vector<16x128xf32>
    %40 = arith.truncf %39 : vector<16x128xf32> to vector<16x128xbf16>
    %c0_23 = arith.constant 0 : index
    %c0_24 = arith.constant 0 : index
    %41 = vector.load %arg7[%c0_23, %c0_24] : memref<16x128xbf16, #tpu.memory_space<vmem>>, vector<16x128xbf16>
    tpu.vector_store %arg7[%c0_23, %c0_24], %40 {strides = array<i32>} : memref<16x128xbf16, #tpu.memory_space<vmem>>, vector<16x128xbf16>,
    return
  }
  func.func @transform_0(%arg0: i32) -> (i32, i32) {
    %c0_i32 = arith.constant 0 : i32
    %c0_i32_0 = arith.constant 0 : i32
    return %arg0, %c0_i32 : i32, i32
  }
  func.func @transform_1(%arg0: i32) -> (i32, i32) {
    %c0_i32 = arith.constant 0 : i32
    %c0_i32_0 = arith.constant 0 : i32
    %c0_i32_1 = arith.constant 0 : i32
    return %c0_i32, %c0_i32_0 : i32, i32
  }
  func.func @transform_2(%arg0: i32) -> (i32, i32) {
    %c0_i32 = arith.constant 0 : i32
    %c0_i32_0 = arith.constant 0 : i32
    %c0_i32_1 = arith.constant 0 : i32
    return %c0_i32, %c0_i32_0 : i32, i32
  }
  func.func @transform_3(%arg0: i32) -> (i32, i32) {
    %c0_i32 = arith.constant 0 : i32
    %c0_i32_0 = arith.constant 0 : i32
    %c0_i32_1 = arith.constant 0 : i32
    return %c0_i32, %c0_i32_0 : i32, i32
  }
  func.func @transform_4(%arg0: i32) -> (i32, i32) {
    %c0_i32 = arith.constant 0 : i32
    %c0_i32_0 = arith.constant 0 : i32
    %c0_i32_1 = arith.constant 0 : i32
    return %c0_i32, %c0_i32_0 : i32, i32
  }
  func.func @transform_5(%arg0: i32) -> (i32, i32) {
    %c0_i32 = arith.constant 0 : i32
    %c0_i32_0 = arith.constant 0 : i32
    %c0_i32_1 = arith.constant 0 : i32
    return %c0_i32, %c0_i32_0 : i32, i32
  }
  func.func @transform_6(%arg0: i32) -> (i32, i32) {
    %c0_i32 = arith.constant 0 : i32
    %c0_i32_0 = arith.constant 0 : i32
    return %arg0, %c0_i32 : i32, i32
  }
}

module attributes {stable_mosaic.version = 11 : i64} {
  func.func @_housenet_kernel(%arg0: i32, %arg1: memref<16x16xbf16, #tpu.memory_space<vmem>>, %arg2: memref<6x128xf32, #tpu.memory_space<vmem>>, %arg3: memref<16x128xbf16, #tpu.memory_space<vmem>>, %arg4: memref<128x128xbf16, #tpu.memory_space<vmem>>, %arg5: memref<128x128xbf16, #tpu.memory_space<vmem>>, %arg6: memref<128x128xbf16, #tpu.memory_space<vmem>>, %arg7: memref<16x128xbf16, #tpu.memory_space<vmem>>) attributes {dimension_semantics = [#tpu.dimension_semantics<parallel>], iteration_bounds = array<i64: 1>, scalar_prefetch = 0 : i64, scratch_operands = 0 : i64, tpu.core_type = #tpu.core_type<tc>, window_params = [{transform_indices = @transform_0, window_bounds = array<i64: 16, 16>}, {pipeline_mode = #tpu.pipeline_mode<synchronous>, transform_indices = @transform_1, window_bounds = array<i64: 6, 128>}, {pipeline_mode = #tpu.pipeline_mode<synchronous>, transform_indices = @transform_2, window_bounds = array<i64: 16, 128>}, {pipeline_mode = #tpu.pipeline_mode<synchronous>, transform_indices = @transform_3, window_bounds = array<i64: 128, 128>}, {pipeline_mode = #tpu.pipeline_mode<synchronous>, transform_indices = @transform_4, window_bounds = array<i64: 128, 128>}, {pipeline_mode = #tpu.pipeline_mode<synchronous>, transform_indices = @transform_5, window_bounds = array<i64: 128, 128>}, {transform_indices = @transform_6, window_bounds = array<i64: 16, 128>}]} {
    %c0 = arith.constant 0 : index
    %c0_0 = arith.constant 0 : index
    %0 = vector.load %arg1[%c0, %c0_0] : memref<16x16xbf16, #tpu.memory_space<vmem>>, vector<16x16xbf16>
    %c0_1 = arith.constant 0 : index
    %c0_2 = arith.constant 0 : index
    %1 = vector.load %arg3[%c0_1, %c0_2] : memref<16x128xbf16, #tpu.memory_space<vmem>>, vector<16x128xbf16>
    %cst = arith.constant dense<0.000000e+00> : vector<16x128xf32>
    %2 = tpu.matmul %0, %1, %cst {dimension_numbers = #tpu.dot_dimension_numbers<[1], [0], [0], [1], [0, 0, 1, 1], [], []>} : vector<16x16xbf16>, vector<16x128xbf16>, vector<16x128xf32> -> vector<16x128xf32>
    %c0_3 = arith.constant 0 : index
    %c0_4 = arith.constant 0 : index
    %3 = vector.load %arg2[%c0_3, %c0_4] : memref<6x128xf32, #tpu.memory_space<vmem>>, vector<1x128xf32>
    %4 = vector.broadcast %3 : vector<1x128xf32> to vector<16x128xf32>
    %5 = arith.addf %2, %4 : vector<16x128xf32>
    %6 = arith.truncf %5 : vector<16x128xf32> to vector<16x128xbf16>
    %c0_5 = arith.constant 0 : index
    %c0_6 = arith.constant 0 : index
    %7 = vector.load %arg4[%c0_5, %c0_6] : memref<128x128xbf16, #tpu.memory_space<vmem>>, vector<128x128xbf16>
    %cst_7 = arith.constant dense<0.000000e+00> : vector<16x128xf32>
    %8 = tpu.matmul %6, %7, %cst_7 {dimension_numbers = #tpu.dot_dimension_numbers<[1], [0], [0], [1], [0, 0, 1, 1], [], []>} : vector<16x128xbf16>, vector<128x128xbf16>, vector<16x128xf32> -> vector<16x128xf32>
    %c4 = arith.constant 4 : index
    %c0_8 = arith.constant 0 : index
    %9 = vector.load %arg2[%c4, %c0_8] : memref<6x128xf32, #tpu.memory_space<vmem>>, vector<1x128xf32>
    %10 = vector.broadcast %9 : vector<1x128xf32> to vector<16x128xf32>
    %11 = arith.mulf %8, %10 : vector<16x128xf32>
    %c1 = arith.constant 1 : index
    %c0_9 = arith.constant 0 : index
    %12 = vector.load %arg2[%c1, %c0_9] : memref<6x128xf32, #tpu.memory_space<vmem>>, vector<1x128xf32>
    %13 = vector.broadcast %12 : vector<1x128xf32> to vector<16x128xf32>
    %14 = arith.addf %11, %13 : vector<16x128xf32>
    %cst_10 = arith.constant 0.000000e+00 : f32
    %15 = vector.broadcast %cst_10 : f32 to vector<16x128xf32>
    %16 = arith.cmpf ogt, %14, %15 : vector<16x128xf32>
    %cst_11 = arith.constant 0.00999999977 : f32
    %17 = vector.broadcast %cst_11 : f32 to vector<16x128xf32>
    %18 = arith.mulf %17, %14 : vector<16x128xf32>
    %19 = arith.select %16, %14, %18 : vector<16x128xi1>, vector<16x128xf32>
    %20 = arith.truncf %19 : vector<16x128xf32> to vector<16x128xbf16>
    %c0_12 = arith.constant 0 : index
    %c0_13 = arith.constant 0 : index
    %21 = vector.load %arg5[%c0_12, %c0_13] : memref<128x128xbf16, #tpu.memory_space<vmem>>, vector<128x128xbf16>
    %cst_14 = arith.constant dense<0.000000e+00> : vector<16x128xf32>
    %22 = tpu.matmul %20, %21, %cst_14 {dimension_numbers = #tpu.dot_dimension_numbers<[1], [0], [0], [1], [0, 0, 1, 1], [], []>} : vector<16x128xbf16>, vector<128x128xbf16>, vector<16x128xf32> -> vector<16x128xf32>
    %c5 = arith.constant 5 : index
    %c0_15 = arith.constant 0 : index
    %23 = vector.load %arg2[%c5, %c0_15] : memref<6x128xf32, #tpu.memory_space<vmem>>, vector<1x128xf32>
    %24 = vector.broadcast %23 : vector<1x128xf32> to vector<16x128xf32>
    %25 = arith.mulf %22, %24 : vector<16x128xf32>
    %c2 = arith.constant 2 : index
    %c0_16 = arith.constant 0 : index
    %26 = vector.load %arg2[%c2, %c0_16] : memref<6x128xf32, #tpu.memory_space<vmem>>, vector<1x128xf32>
    %27 = vector.broadcast %26 : vector<1x128xf32> to vector<16x128xf32>
    %28 = arith.addf %25, %27 : vector<16x128xf32>
    %cst_17 = arith.constant 0.000000e+00 : f32
    %29 = vector.broadcast %cst_17 : f32 to vector<16x128xf32>
    %30 = arith.cmpf ogt, %28, %29 : vector<16x128xf32>
    %cst_18 = arith.constant 0.00999999977 : f32
    %31 = vector.broadcast %cst_18 : f32 to vector<16x128xf32>
    %32 = arith.mulf %31, %28 : vector<16x128xf32>
    %33 = arith.select %30, %28, %32 : vector<16x128xi1>, vector<16x128xf32>
    %34 = arith.truncf %33 : vector<16x128xf32> to vector<16x128xbf16>
    %c0_19 = arith.constant 0 : index
    %c0_20 = arith.constant 0 : index
    %35 = vector.load %arg6[%c0_19, %c0_20] : memref<128x128xbf16, #tpu.memory_space<vmem>>, vector<128x128xbf16>
    %cst_21 = arith.constant dense<0.000000e+00> : vector<16x128xf32>
    %36 = tpu.matmul %34, %35, %cst_21 {dimension_numbers = #tpu.dot_dimension_numbers<[1], [0], [0], [1], [0, 0, 1, 1], [], []>} : vector<16x128xbf16>, vector<128x128xbf16>, vector<16x128xf32> -> vector<16x128xf32>
    %c3 = arith.constant 3 : index
    %c0_22 = arith.constant 0 : index
    %37 = vector.load %arg2[%c3, %c0_22] : memref<6x128xf32, #tpu.memory_space<vmem>>, vector<1x128xf32>
    %38 = vector.broadcast %37 : vector<1x128xf32> to vector<16x128xf32>
    %39 = arith.addf %36, %38 : vector<16x128xf32>
    %40 = arith.truncf %39 : vector<16x128xf32> to vector<16x128xbf16>
    %c0_23 = arith.constant 0 : index
    %c0_24 = arith.constant 0 : index
    %41 = vector.load %arg7[%c0_23, %c0_24] : memref<16x128xbf16, #tpu.memory_space<vmem>>, vector<16x128xbf16>
    tpu.vector_store %arg7[%c0_23, %c0_24], %40 {strides = array<i32>} : memref<16x128xbf16, #tpu.memory_space<vmem>>, vector<16x128xbf16>,
    return
  }
  func.func @transform_0(%arg0: i32) -> (i32, i32) {
    %c0_i32 = arith.constant 0 : i32
    %c0_i32_0 = arith.constant 0 : i32
    return %arg0, %c0_i32 : i32, i32
  }
  func.func @transform_1(%arg0: i32) -> (i32, i32) {
    %c0_i32 = arith.constant 0 : i32
    %c0_i32_0 = arith.constant 0 : i32
    %c0_i32_1 = arith.constant 0 : i32
    return %c0_i32, %c0_i32_0 : i32, i32
  }
  func.func @transform_2(%arg0: i32) -> (i32, i32) {
    %c0_i32 = arith.constant 0 : i32
    %c0_i32_0 = arith.constant 0 : i32
    %c0_i32_1 = arith.constant 0 : i32
    return %c0_i32, %c0_i32_0 : i32, i32
  }
  func.func @transform_3(%arg0: i32) -> (i32, i32) {
    %c0_i32 = arith.constant 0 : i32
    %c0_i32_0 = arith.constant 0 : i32
    %c0_i32_1 = arith.constant 0 : i32
    return %c0_i32, %c0_i32_0 : i32, i32
  }
  func.func @transform_4(%arg0: i32) -> (i32, i32) {
    %c0_i32 = arith.constant 0 : i32
    %c0_i32_0 = arith.constant 0 : i32
    %c0_i32_1 = arith.constant 0 : i32
    return %c0_i32, %c0_i32_0 : i32, i32
  }
  func.func @transform_5(%arg0: i32) -> (i32, i32) {
    %c0_i32 = arith.constant 0 : i32
    %c0_i32_0 = arith.constant 0 : i32
    %c0_i32_1 = arith.constant 0 : i32
    return %c0_i32, %c0_i32_0 : i32, i32
  }
  func.func @transform_6(%arg0: i32) -> (i32, i32) {
    %c0_i32 = arith.constant 0 : i32
    %c0_i32_0 = arith.constant 0 : i32
    return %arg0, %c0_i32 : i32, i32
  }
}

</mosaic_0001>

<llo_original>
// kernel: tpu_custom_call.1
$region0: #{tpu_custom_call.1}
  #allocation0 [shape = 'u32[]', space=smem, size = 0x4, offset = 0x4, fixed_abs, tag = 'smem constant byte address 0x4 - core index']
  #allocation1 [shape = 'u32[144,128]{1,0:T(1,128)}', space=vmem, size = 0x12000, scoped, tag = 'internal scratch']
  %s0 = inlined_call_operand.hbm [shape: bf16[16,16], index: 0, kind: input, shape index: {}]
  %s1 = inlined_call_operand.hbm [shape: f32[6,128], index: 1, kind: input, shape index: {}]
  %s2 = inlined_call_operand.hbm [shape: bf16[16,128], index: 2, kind: input, shape index: {}]
  %s3 = inlined_call_operand.hbm [shape: bf16[128,128], index: 3, kind: input, shape index: {}]
  %s4 = inlined_call_operand.hbm [shape: bf16[128,128], index: 4, kind: input, shape index: {}]
  %s5 = inlined_call_operand.hbm [shape: bf16[128,128], index: 5, kind: input, shape index: {}]
  %s6 = inlined_call_operand.hbm [shape: bf16[16,128], index: 6, kind: output, shape index: {}]
  %s7 = sld [smem:[#allocation0]]
  $region58: #{tpu_custom_call.1} parent=0
    _
  %s9 = ssub.s32 1, %s7
  %s10 = scalar_select 0, %s9, %s7
  $region1: #{tpu_custom_call.1} parent=0
    #allocation2 [shape = 'u8[4096]{0}', space=vmem, size = 0x1000, scoped, tag = 'input window, operand 0, single buffered']
    #allocation3 [shape = 's32[1]{0}', space=sflag, size = 0x4, scoped, tag = 'scoped memory for tpu_custom_call.1']
    #allocation4 [shape = 's32[1]{0}', space=sflag, size = 0x4, scoped, tag = 'scoped memory for tpu_custom_call.1']
    #allocation5 [shape = 'u8[4096]{0}', space=vmem, size = 0x1000, scoped, tag = 'input window, operand 1, single buffered']
    #allocation6 [shape = 's32[1]{0}', space=sflag, size = 0x4, scoped, tag = 'scoped memory for tpu_custom_call.1']
    #allocation7 [shape = 'u8[4096]{0}', space=vmem, size = 0x1000, scoped, tag = 'input window, operand 2, single buffered']
    #allocation8 [shape = 'u8[32768]{0}', space=vmem, size = 0x8000, scoped, tag = 'input window, operand 3, single buffered']
    #allocation9 [shape = 's32[1]{0}', space=sflag, size = 0x4, scoped, tag = 'scoped memory for tpu_custom_call.1']
    #allocation10 [shape = 'u8[32768]{0}', space=vmem, size = 0x8000, scoped, tag = 'input window, operand 4, single buffered']
    #allocation11 [shape = 'u8[32768]{0}', space=vmem, size = 0x8000, scoped, tag = 'input window, operand 5, single buffered']
    #allocation12 [shape = 's32[1]{0}', space=sflag, size = 0x4, scoped, tag = 'scoped memory for tpu_custom_call.1']
    #allocation13 [shape = 'u8[4096]{0}', space=vmem, size = 0x1000, scoped, tag = 'output window, operand 0, single buffered']
    %11 = vsyncpa [#allocation3], 0
    %12 = vsyncpa [#allocation6], 0
    %13 = vsyncpa [#allocation9], 0
    %14 = vsyncpa [#allocation12], 0
    %15 = vsyncpa [#allocation4], 0
    // Predicated region
    $region2: #{tpu_custom_call.1} parent=1 // pred_check
      _
    $region3: #{tpu_custom_call.1} parent=1 // pred_check_branch
      %17 = sbr.rel (0) target = $region5
    $region4: #{tpu_custom_call.1} parent=1 // pred_region
      %s19 = ssub.s32 128, 128
      %20 = vsyncadd [#allocation3], %s19
      %s21 = sshll.u32 [#allocation2], 4
      %s22 = int_to_ptr.vmem [resolvable:$true] %s21
      %27 = dma.hbm_to_vmem [thread:$0]  %s0, 128, %s22, [#allocation3], 64, 64, 4
    $region5: #{tpu_custom_call.1} parent=1 // pred_fallthru
      _
    // Predicated region
    $region6: #{tpu_custom_call.1} parent=1 // pred_check
      _
    $region7: #{tpu_custom_call.1} parent=1 // pred_check_branch
      %29 = sbr.rel (0) target = $region9
    $region8: #{tpu_custom_call.1} parent=1 // pred_region
      %s31 = ssub.s32 128, 128
      %32 = vsyncadd [#allocation6], %s31
      %s34 = sshll.u32 [#allocation5], 4
      %s35 = int_to_ptr.vmem [resolvable:$true] %s34
      %37 = dma.hbm_to_vmem [thread:$0]  %s1, 128, %s35, [#allocation6]
    $region9: #{tpu_custom_call.1} parent=1 // pred_fallthru
      _
    // Predicated region
    $region10: #{tpu_custom_call.1} parent=1 // pred_check
      _
    $region11: #{tpu_custom_call.1} parent=1 // pred_check_branch
      %39 = sbr.rel (0) target = $region13
    $region12: #{tpu_custom_call.1} parent=1 // pred_region
      %s41 = ssub.s32 128, 128
      %42 = vsyncadd [#allocation6], %s41
      %s43 = sshll.u32 [#allocation7], 4
      %s44 = int_to_ptr.vmem [resolvable:$true] %s43
      %49 = dma.hbm_to_vmem [thread:$0]  %s2, 128, %s44, [#allocation6], 64, 64, 4
    $region13: #{tpu_custom_call.1} parent=1 // pred_fallthru
      _
    // Predicated region
    $region14: #{tpu_custom_call.1} parent=1 // pred_check
      _
    $region15: #{tpu_custom_call.1} parent=1 // pred_check_branch
      %51 = sbr.rel (0) target = $region17
    $region16: #{tpu_custom_call.1} parent=1 // pred_region
      %s53 = ssub.s32 1024, 1024
      %54 = vsyncadd [#allocation9], %s53
      %s55 = sshll.u32 [#allocation8], 4
      %s56 = int_to_ptr.vmem [resolvable:$true] %s55
      %61 = dma.hbm_to_vmem [thread:$0]  %s3, 1024, %s56, [#allocation9], 64, 64, 4
    $region17: #{tpu_custom_call.1} parent=1 // pred_fallthru
      _
    // Predicated region
    $region18: #{tpu_custom_call.1} parent=1 // pred_check
      _
    $region19: #{tpu_custom_call.1} parent=1 // pred_check_branch
      %63 = sbr.rel (0) target = $region21
    $region20: #{tpu_custom_call.1} parent=1 // pred_region
      %s65 = ssub.s32 1024, 1024
      %66 = vsyncadd [#allocation9], %s65
      %s67 = sshll.u32 [#allocation10], 4
      %s68 = int_to_ptr.vmem [resolvable:$true] %s67
      %73 = dma.hbm_to_vmem [thread:$0]  %s4, 1024, %s68, [#allocation9], 64, 64, 4
    $region21: #{tpu_custom_call.1} parent=1 // pred_fallthru
      _
    // Predicated region
    $region22: #{tpu_custom_call.1} parent=1 // pred_check
      _
    $region23: #{tpu_custom_call.1} parent=1 // pred_check_branch
      %75 = sbr.rel (0) target = $region25
    $region24: #{tpu_custom_call.1} parent=1 // pred_region
      %s77 = ssub.s32 1024, 1024
      %78 = vsyncadd [#allocation12], %s77
      %s79 = sshll.u32 [#allocation11], 4
      %s80 = int_to_ptr.vmem [resolvable:$true] %s79
      %85 = dma.hbm_to_vmem [thread:$0]  %s5, 1024, %s80, [#allocation12], 64, 64, 4
    $region25: #{tpu_custom_call.1} parent=1 // pred_fallthru
      _
    // Predicated region
    $region26: #{tpu_custom_call.1} parent=1 // pred_check
      _
    $region27: #{tpu_custom_call.1} parent=1 // pred_check_branch
      %87 = sbr.rel (0) target = $region29
    $region28: #{tpu_custom_call.1} parent=1 // pred_region
      %88 = dma.done [#allocation3], 128
    $region29: #{tpu_custom_call.1} parent=1 // pred_fallthru
      _
    // Predicated region
    $region30: #{tpu_custom_call.1} parent=1 // pred_check
      _
    $region31: #{tpu_custom_call.1} parent=1 // pred_check_branch
      %90 = sbr.rel (0) target = $region33
    $region32: #{tpu_custom_call.1} parent=1 // pred_region
      %91 = dma.done [#allocation6], 128
    $region33: #{tpu_custom_call.1} parent=1 // pred_fallthru
      _
    // Predicated region
    $region34: #{tpu_custom_call.1} parent=1 // pred_check
      _
    $region35: #{tpu_custom_call.1} parent=1 // pred_check_branch
      %93 = sbr.rel (0) target = $region37
    $region36: #{tpu_custom_call.1} parent=1 // pred_region
      %94 = dma.done [#allocation6], 128
    $region37: #{tpu_custom_call.1} parent=1 // pred_fallthru
      _
    // Predicated region
    $region38: #{tpu_custom_call.1} parent=1 // pred_check
      _
    $region39: #{tpu_custom_call.1} parent=1 // pred_check_branch
      %96 = sbr.rel (0) target = $region41
    $region40: #{tpu_custom_call.1} parent=1 // pred_region
      %97 = dma.done [#allocation9], 1024
    $region41: #{tpu_custom_call.1} parent=1 // pred_fallthru
      _
    // Predicated region
    $region42: #{tpu_custom_call.1} parent=1 // pred_check
      _
    $region43: #{tpu_custom_call.1} parent=1 // pred_check_branch
      %99 = sbr.rel (0) target = $region45
    $region44: #{tpu_custom_call.1} parent=1 // pred_region
      %100 = dma.done [#allocation9], 1024
    $region45: #{tpu_custom_call.1} parent=1 // pred_fallthru
      _
    // Predicated region
    $region46: #{tpu_custom_call.1} parent=1 // pred_check
      _
    $region47: #{tpu_custom_call.1} parent=1 // pred_check_branch
      %102 = sbr.rel (0) target = $region49
    $region48: #{tpu_custom_call.1} parent=1 // pred_region
      %103 = dma.done [#allocation12], 1024
    $region49: #{tpu_custom_call.1} parent=1 // pred_fallthru
      _
    %v105 = vld [vmem:[#allocation2] sm:$0xf]
    %v106 = vld [vmem:[#allocation2 + $0x4] sm:$0xf]
    %v107 = vld [vmem:[#allocation7] sm:$0xf]
    %v108 = vld [vmem:[#allocation7 + $0x4] sm:$0xf]
    %v109 = vld [vmem:[#allocation5] sm:$0x1]
    %v110 = vlaneseq
    %v111 = vshrl.u32 %v110, 7
    %v112 = vsub.s32 0, %v111
    %v113 = vrot.slane %v109, %v112
    %v116 = vunpack.c.l.b16 %v105
    %v117 = vunpack.c.l.b16 %v106
    %v118 = vpack.c.b16 %v117, %v116
    %v121 = vunpack.c.l.b16 %v107
    %v122 = vunpack.c.l.b16 %v108
    %v123 = vpack.c.b16 %v122, %v121
    %vm125 = vcmask 130048
    %v127 = vsel %vm125, %v118, 0
    %129 = vmatprep.subr.bf16.mxu0 0
    %130 = vmatpush1.bf16.msra.mxu0 %v123
    %131 = vmatprep.subr.bf16.mxu0 0
    %132 = vmatpush1.bf16.msra.mxu0 0
    %133 = vmatprep.subr.bf16.mxu0 0
    %134 = vmatpush1.bf16.msra.mxu0 0
    %135 = vmatprep.subr.bf16.mxu0 0
    %136 = vmatpush1.bf16.msra.mxu0 0
    %137 = vmatprep.subr.bf16.mxu0 0
    %138 = vmatpush1.bf16.msra.mxu0 0
    %139 = vmatprep.subr.bf16.mxu0 0
    %140 = vmatpush1.bf16.msra.mxu0 0
    %141 = vmatprep.subr.bf16.mxu0 0
    %142 = vmatpush1.bf16.msra.mxu0 0
    %143 = vmatprep.subr.bf16.mxu0 0
    %144 = vmatpush1.bf16.msra.mxu0 0
    %145 = vmatprep.subr.bf16.mxu0 0
    %146 = vmatpush1.bf16.msra.mxu0 0
    %147 = vmatprep.subr.bf16.mxu0 0
    %148 = vmatpush1.bf16.msra.mxu0 0
    %149 = vmatprep.subr.bf16.mxu0 0
    %150 = vmatpush1.bf16.msra.mxu0 0
    %151 = vmatprep.subr.bf16.mxu0 0
    %152 = vmatpush1.bf16.msra.mxu0 0
    %153 = vmatprep.subr.bf16.mxu0 0
    %154 = vmatpush1.bf16.msra.mxu0 0
    %155 = vmatprep.subr.bf16.mxu0 0
    %156 = vmatpush1.bf16.msra.mxu0 0
    %157 = vmatprep.subr.bf16.mxu0 0
    %158 = vmatpush1.bf16.msra.mxu0 0
    %159 = vmatprep.subr.bf16.mxu0 0
    %160 = vmatpush1.bf16.msra.mxu0 0
    %161 = vmatprep.mubr.bf16.mxu0 0
    %162 = vmatmul.mubr.bf16.gmra.mrb[0].mxu0 %v127
    %v163 = vpop.f32.mrb[0].mxu0
    %v164 = vadd.f32 %v113, %v163
    %v165 = vpop.f32.mrb[0].mxu0
    %v166 = vpop.f32.mrb[0].mxu0
    %v167 = vadd.f32 %v113, %v166
    %v168 = vpop.f32.mrb[0].mxu0
    %169 = vdwg.mxu0
    %v170 = vpack.c.bf16 %v167, %v164
    %v171 = vld [vmem:[#allocation8] sm:$0xf]
    %v172 = vld [vmem:[#allocation8 + $0x4] sm:$0xf]
    %v173 = vld [vmem:[#allocation8 + $0x8] sm:$0xf]
    %v174 = vld [vmem:[#allocation8 + $0xc] sm:$0xf]
    %v175 = vld [vmem:[#allocation8 + $0x10] sm:$0xf]
    %v176 = vld [vmem:[#allocation8 + $0x14] sm:$0xf]
    %v177 = vld [vmem:[#allocation8 + $0x18] sm:$0xf]
    %v178 = vld [vmem:[#allocation8 + $0x1c] sm:$0xf]
    %v179 = vld [vmem:[#allocation8 + $0x20] sm:$0xf]
    %v180 = vld [vmem:[#allocation8 + $0x24] sm:$0xf]
    %v181 = vld [vmem:[#allocation8 + $0x28] sm:$0xf]
    %v182 = vld [vmem:[#allocation8 + $0x2c] sm:$0xf]
    %v183 = vld [vmem:[#allocation8 + $0x30] sm:$0xf]
    %v184 = vld [vmem:[#allocation8 + $0x34] sm:$0xf]
    %v185 = vld [vmem:[#allocation8 + $0x38] sm:$0xf]
    %v186 = vld [vmem:[#allocation8 + $0x3c] sm:$0xf]
    %v203 = vunpack.c.l.b16 %v171
    %v204 = vunpack.c.l.b16 %v172
    %v205 = vunpack.c.l.b16 %v173
    %v206 = vunpack.c.l.b16 %v174
    %v207 = vunpack.c.l.b16 %v175
    %v208 = vunpack.c.l.b16 %v176
    %v209 = vunpack.c.l.b16 %v177
    %v210 = vunpack.c.l.b16 %v178
    %v211 = vunpack.c.l.b16 %v179
    %v212 = vunpack.c.l.b16 %v180
    %v213 = vunpack.c.l.b16 %v181
    %v214 = vunpack.c.l.b16 %v182
    %v215 = vunpack.c.l.b16 %v183
    %v216 = vunpack.c.l.b16 %v184
    %v217 = vunpack.c.l.b16 %v185
    %v218 = vunpack.c.l.b16 %v186
    %v219 = vpack.c.b16 %v204, %v203
    %v220 = vpack.c.b16 %v206, %v205
    %v221 = vpack.c.b16 %v208, %v207
    %v222 = vpack.c.b16 %v210, %v209
    %v223 = vpack.c.b16 %v212, %v211
    %v224 = vpack.c.b16 %v214, %v213
    %v225 = vpack.c.b16 %v216, %v215
    %v226 = vpack.c.b16 %v218, %v217
    %235 = vmatprep.subr.bf16.mxu0 0
    %236 = vmatpush1.bf16.msra.mxu0 %v219
    %237 = vmatprep.subr.bf16.mxu0 0
    %238 = vmatpush1.bf16.msra.mxu0 %v220
    %239 = vmatprep.subr.bf16.mxu0 0
    %240 = vmatpush1.bf16.msra.mxu0 %v221
    %241 = vmatprep.subr.bf16.mxu0 0
    %242 = vmatpush1.bf16.msra.mxu0 %v222
    %243 = vmatprep.subr.bf16.mxu0 0
    %244 = vmatpush1.bf16.msra.mxu0 %v223
    %245 = vmatprep.subr.bf16.mxu0 0
    %246 = vmatpush1.bf16.msra.mxu0 %v224
    %247 = vmatprep.subr.bf16.mxu0 0
    %248 = vmatpush1.bf16.msra.mxu0 %v225
    %249 = vmatprep.subr.bf16.mxu0 0
    %250 = vmatpush1.bf16.msra.mxu0 %v226
    %251 = vmatprep.subr.bf16.mxu0 0
    %252 = vmatpush1.bf16.msra.mxu0 0
    %253 = vmatprep.subr.bf16.mxu0 0
    %254 = vmatpush1.bf16.msra.mxu0 0
    %255 = vmatprep.subr.bf16.mxu0 0
    %256 = vmatpush1.bf16.msra.mxu0 0
    %257 = vmatprep.subr.bf16.mxu0 0
    %258 = vmatpush1.bf16.msra.mxu0 0
    %259 = vmatprep.subr.bf16.mxu0 0
    %260 = vmatpush1.bf16.msra.mxu0 0
    %261 = vmatprep.subr.bf16.mxu0 0
    %262 = vmatpush1.bf16.msra.mxu0 0
    %263 = vmatprep.subr.bf16.mxu0 0
    %264 = vmatpush1.bf16.msra.mxu0 0
    %265 = vmatprep.subr.bf16.mxu0 0
    %266 = vmatpush1.bf16.msra.mxu0 0
    %267 = vmatprep.mubr.bf16.mxu0 0
    %268 = vmatmul.mubr.bf16.gmra.mrb[0].mxu0 %v170
    %v269 = vpop.f32.mrb[0].mxu0
    %v270 = vadd.f32 0.0, %v269
    %v271 = vpop.f32.mrb[0].mxu0
    %v272 = vpop.f32.mrb[0].mxu0
    %v273 = vadd.f32 0.0, %v272
    %v274 = vpop.f32.mrb[0].mxu0
    %275 = vdwg.mxu0
    %v276 = vld [vmem:[#allocation5 + $0x4] sm:$0x1]
    %v277 = vlaneseq
    %v278 = vshrl.u32 %v277, 7
    %v279 = vsub.s32 0, %v278
    %v280 = vrot.slane %v276, %v279
    %v281 = vmul.f32 %v270, %v280
    %v282 = vmul.f32 %v273, %v280
    %v283 = vld [vmem:[#allocation5 + $0x1] sm:$0x1]
    %v284 = vlaneseq
    %v285 = vshrl.u32 %v284, 7
    %v286 = vsub.s32 0, %v285
    %v287 = vrot.slane %v283, %v286
    %v288 = vadd.f32 %v281, %v287
    %v289 = vadd.f32 %v282, %v287
    %vm290 = vcmp.gt.f32.partialorder %v288, 0.0
    %vm291 = vcmp.gt.f32.partialorder %v289, 0.0
    %v292 = vmul.f32 %v288, 0.01
    %v293 = vmul.f32 %v289, 0.01
    %v294 = vsel %vm290, %v288, %v292
    %v295 = vsel %vm291, %v289, %v293
    %v296 = vpack.c.bf16 %v295, %v294
    %v297 = vld [vmem:[#allocation10] sm:$0xf]
    %v298 = vld [vmem:[#allocation10 + $0x4] sm:$0xf]
    %v299 = vld [vmem:[#allocation10 + $0x8] sm:$0xf]
    %v300 = vld [vmem:[#allocation10 + $0xc] sm:$0xf]
    %v301 = vld [vmem:[#allocation10 + $0x10] sm:$0xf]
    %v302 = vld [vmem:[#allocation10 + $0x14] sm:$0xf]
    %v303 = vld [vmem:[#allocation10 + $0x18] sm:$0xf]
    %v304 = vld [vmem:[#allocation10 + $0x1c] sm:$0xf]
    %v305 = vld [vmem:[#allocation10 + $0x20] sm:$0xf]
    %v306 = vld [vmem:[#allocation10 + $0x24] sm:$0xf]
    %v307 = vld [vmem:[#allocation10 + $0x28] sm:$0xf]
    %v308 = vld [vmem:[#allocation10 + $0x2c] sm:$0xf]
    %v309 = vld [vmem:[#allocation10 + $0x30] sm:$0xf]
    %v310 = vld [vmem:[#allocation10 + $0x34] sm:$0xf]
    %v311 = vld [vmem:[#allocation10 + $0x38] sm:$0xf]
    %v312 = vld [vmem:[#allocation10 + $0x3c] sm:$0xf]
    %v329 = vunpack.c.l.b16 %v297
    %v330 = vunpack.c.l.b16 %v298
    %v331 = vunpack.c.l.b16 %v299
    %v332 = vunpack.c.l.b16 %v300
    %v333 = vunpack.c.l.b16 %v301
    %v334 = vunpack.c.l.b16 %v302
    %v335 = vunpack.c.l.b16 %v303
    %v336 = vunpack.c.l.b16 %v304
    %v337 = vunpack.c.l.b16 %v305
    %v338 = vunpack.c.l.b16 %v306
    %v339 = vunpack.c.l.b16 %v307
    %v340 = vunpack.c.l.b16 %v308
    %v341 = vunpack.c.l.b16 %v309
    %v342 = vunpack.c.l.b16 %v310
    %v343 = vunpack.c.l.b16 %v311
    %v344 = vunpack.c.l.b16 %v312
    %v345 = vpack.c.b16 %v330, %v329
    %v346 = vpack.c.b16 %v332, %v331
    %v347 = vpack.c.b16 %v334, %v333
    %v348 = vpack.c.b16 %v336, %v335
    %v349 = vpack.c.b16 %v338, %v337
    %v350 = vpack.c.b16 %v340, %v339
    %v351 = vpack.c.b16 %v342, %v341
    %v352 = vpack.c.b16 %v344, %v343
    %361 = vmatprep.subr.bf16.mxu0 0
    %362 = vmatpush1.bf16.msra.mxu0 %v345
    %363 = vmatprep.subr.bf16.mxu0 0
    %364 = vmatpush1.bf16.msra.mxu0 %v346
    %365 = vmatprep.subr.bf16.mxu0 0
    %366 = vmatpush1.bf16.msra.mxu0 %v347
    %367 = vmatprep.subr.bf16.mxu0 0
    %368 = vmatpush1.bf16.msra.mxu0 %v348
    %369 = vmatprep.subr.bf16.mxu0 0
    %370 = vmatpush1.bf16.msra.mxu0 %v349
    %371 = vmatprep.subr.bf16.mxu0 0
    %372 = vmatpush1.bf16.msra.mxu0 %v350
    %373 = vmatprep.subr.bf16.mxu0 0
    %374 = vmatpush1.bf16.msra.mxu0 %v351
    %375 = vmatprep.subr.bf16.mxu0 0
    %376 = vmatpush1.bf16.msra.mxu0 %v352
    %377 = vmatprep.subr.bf16.mxu0 0
    %378 = vmatpush1.bf16.msra.mxu0 0
    %379 = vmatprep.subr.bf16.mxu0 0
    %380 = vmatpush1.bf16.msra.mxu0 0
    %381 = vmatprep.subr.bf16.mxu0 0
    %382 = vmatpush1.bf16.msra.mxu0 0
    %383 = vmatprep.subr.bf16.mxu0 0
    %384 = vmatpush1.bf16.msra.mxu0 0
    %385 = vmatprep.subr.bf16.mxu0 0
    %386 = vmatpush1.bf16.msra.mxu0 0
    %387 = vmatprep.subr.bf16.mxu0 0
    %388 = vmatpush1.bf16.msra.mxu0 0
    %389 = vmatprep.subr.bf16.mxu0 0
    %390 = vmatpush1.bf16.msra.mxu0 0
    %391 = vmatprep.subr.bf16.mxu0 0
    %392 = vmatpush1.bf16.msra.mxu0 0
    %393 = vmatprep.mubr.bf16.mxu0 0
    %394 = vmatmul.mubr.bf16.gmra.mrb[0].mxu0 %v296
    %v395 = vpop.f32.mrb[0].mxu0
    %v396 = vadd.f32 0.0, %v395
    %v397 = vpop.f32.mrb[0].mxu0
    %v398 = vpop.f32.mrb[0].mxu0
    %v399 = vadd.f32 0.0, %v398
    %v400 = vpop.f32.mrb[0].mxu0
    %401 = vdwg.mxu0
    %v402 = vld [vmem:[#allocation5 + $0x5] sm:$0x1]
    %v403 = vlaneseq
    %v404 = vshrl.u32 %v403, 7
    %v405 = vsub.s32 0, %v404
    %v406 = vrot.slane %v402, %v405
    %v407 = vmul.f32 %v396, %v406
    %v408 = vmul.f32 %v399, %v406
    %v409 = vld [vmem:[#allocation5 + $0x2] sm:$0x1]
    %v410 = vlaneseq
    %v411 = vshrl.u32 %v410, 7
    %v412 = vsub.s32 0, %v411
    %v413 = vrot.slane %v409, %v412
    %v414 = vadd.f32 %v407, %v413
    %v415 = vadd.f32 %v408, %v413
    %vm416 = vcmp.gt.f32.partialorder %v414, 0.0
    %vm417 = vcmp.gt.f32.partialorder %v415, 0.0
    %v418 = vmul.f32 %v414, 0.01
    %v419 = vmul.f32 %v415, 0.01
    %v420 = vsel %vm416, %v414, %v418
    %v421 = vsel %vm417, %v415, %v419
    %v422 = vpack.c.bf16 %v421, %v420
    %v423 = vld [vmem:[#allocation11] sm:$0xf]
    %v424 = vld [vmem:[#allocation11 + $0x4] sm:$0xf]
    %v425 = vld [vmem:[#allocation11 + $0x8] sm:$0xf]
    %v426 = vld [vmem:[#allocation11 + $0xc] sm:$0xf]
    %v427 = vld [vmem:[#allocation11 + $0x10] sm:$0xf]
    %v428 = vld [vmem:[#allocation11 + $0x14] sm:$0xf]
    %v429 = vld [vmem:[#allocation11 + $0x18] sm:$0xf]
    %v430 = vld [vmem:[#allocation11 + $0x1c] sm:$0xf]
    %v431 = vld [vmem:[#allocation11 + $0x20] sm:$0xf]
    %v432 = vld [vmem:[#allocation11 + $0x24] sm:$0xf]
    %v433 = vld [vmem:[#allocation11 + $0x28] sm:$0xf]
    %v434 = vld [vmem:[#allocation11 + $0x2c] sm:$0xf]
    %v435 = vld [vmem:[#allocation11 + $0x30] sm:$0xf]
    %v436 = vld [vmem:[#allocation11 + $0x34] sm:$0xf]
    %v437 = vld [vmem:[#allocation11 + $0x38] sm:$0xf]
    %v438 = vld [vmem:[#allocation11 + $0x3c] sm:$0xf]
    %v439 = vld [vmem:[#allocation5 + $0x3] sm:$0x1]
    %v440 = vlaneseq
    %v441 = vshrl.u32 %v440, 7
    %v442 = vsub.s32 0, %v441
    %v443 = vrot.slane %v439, %v442
    %v460 = vunpack.c.l.b16 %v423
    %v461 = vunpack.c.l.b16 %v424
    %v462 = vunpack.c.l.b16 %v425
    %v463 = vunpack.c.l.b16 %v426
    %v464 = vunpack.c.l.b16 %v427
    %v465 = vunpack.c.l.b16 %v428
    %v466 = vunpack.c.l.b16 %v429
    %v467 = vunpack.c.l.b16 %v430
    %v468 = vunpack.c.l.b16 %v431
    %v469 = vunpack.c.l.b16 %v432
    %v470 = vunpack.c.l.b16 %v433
    %v471 = vunpack.c.l.b16 %v434
    %v472 = vunpack.c.l.b16 %v435
    %v473 = vunpack.c.l.b16 %v436
    %v474 = vunpack.c.l.b16 %v437
    %v475 = vunpack.c.l.b16 %v438
    %v476 = vpack.c.b16 %v461, %v460
    %v477 = vpack.c.b16 %v463, %v462
    %v478 = vpack.c.b16 %v465, %v464
    %v479 = vpack.c.b16 %v467, %v466
    %v480 = vpack.c.b16 %v469, %v468
    %v481 = vpack.c.b16 %v471, %v470
    %v482 = vpack.c.b16 %v473, %v472
    %v483 = vpack.c.b16 %v475, %v474
    %492 = vmatprep.subr.bf16.mxu0 0
    %493 = vmatpush1.bf16.msra.mxu0 %v476
    %494 = vmatprep.subr.bf16.mxu0 0
    %495 = vmatpush1.bf16.msra.mxu0 %v477
    %496 = vmatprep.subr.bf16.mxu0 0
    %497 = vmatpush1.bf16.msra.mxu0 %v478
    %498 = vmatprep.subr.bf16.mxu0 0
    %499 = vmatpush1.bf16.msra.mxu0 %v479
    %500 = vmatprep.subr.bf16.mxu0 0
    %501 = vmatpush1.bf16.msra.mxu0 %v480
    %502 = vmatprep.subr.bf16.mxu0 0
    %503 = vmatpush1.bf16.msra.mxu0 %v481
    %504 = vmatprep.subr.bf16.mxu0 0
    %505 = vmatpush1.bf16.msra.mxu0 %v482
    %506 = vmatprep.subr.bf16.mxu0 0
    %507 = vmatpush1.bf16.msra.mxu0 %v483
    %508 = vmatprep.subr.bf16.mxu0 0
    %509 = vmatpush1.bf16.msra.mxu0 0
    %510 = vmatprep.subr.bf16.mxu0 0
    %511 = vmatpush1.bf16.msra.mxu0 0
    %512 = vmatprep.subr.bf16.mxu0 0
    %513 = vmatpush1.bf16.msra.mxu0 0
    %514 = vmatprep.subr.bf16.mxu0 0
    %515 = vmatpush1.bf16.msra.mxu0 0
    %516 = vmatprep.subr.bf16.mxu0 0
    %517 = vmatpush1.bf16.msra.mxu0 0
    %518 = vmatprep.subr.bf16.mxu0 0
    %519 = vmatpush1.bf16.msra.mxu0 0
    %520 = vmatprep.subr.bf16.mxu0 0
    %521 = vmatpush1.bf16.msra.mxu0 0
    %522 = vmatprep.subr.bf16.mxu0 0
    %523 = vmatpush1.bf16.msra.mxu0 0
    %524 = vmatprep.mubr.bf16.mxu0 0
    %525 = vmatmul.mubr.bf16.gmra.mrb[0].mxu0 %v422
    %v526 = vpop.f32.mrb[0].mxu0
    %v527 = vadd.f32 %v443, %v526
    %v528 = vpop.f32.mrb[0].mxu0
    %v529 = vpop.f32.mrb[0].mxu0
    %v530 = vadd.f32 %v443, %v529
    %v531 = vpop.f32.mrb[0].mxu0
    %532 = vdwg.mxu0
    %v533 = vpack.c.bf16 %v530, %v527
    %v535 = vunpack.c.l.b16 %v533
    %v536 = vunpack.c.h.b16 %v533
    %v537 = vpack.c.b16 %v535, %v535
    %v538 = vpack.c.b16 %v536, %v536
    %541 = vst [vmem:[#allocation13] sm:$0xf] %v537
    %542 = vst [vmem:[#allocation13 + $0x4] sm:$0xf] %v538
    // Predicated region
    $region50: #{tpu_custom_call.1} parent=1 // pred_check
      _
    $region51: #{tpu_custom_call.1} parent=1 // pred_check_branch
      %544 = sbr.rel (0) target = $region53
    $region52: #{tpu_custom_call.1} parent=1 // pred_region
      %s546 = ssub.s32 128, 128
      %547 = vsyncadd [#allocation4], %s546
      %s548 = sshll.u32 [#allocation13], 4
      %s549 = int_to_ptr.vmem [resolvable:$true] %s548
      %554 = dma.vmem_to_hbm [thread:$0]  %s549, 128, %s6, [#allocation4], 64, 64, 4
    $region53: #{tpu_custom_call.1} parent=1 // pred_fallthru
      _
    // Predicated region
    $region54: #{tpu_custom_call.1} parent=1 // pred_check
      _
    $region55: #{tpu_custom_call.1} parent=1 // pred_check_branch
      %556 = sbr.rel (0) target = $region57
    $region56: #{tpu_custom_call.1} parent=1 // pred_region
      %557 = dma.done [#allocation4], 128
    $region57: #{tpu_custom_call.1} parent=1 // pred_fallthru
      _
    %558 = vsyncpa [#allocation3], 1
    %559 = vsyncpa [#allocation6], 1
    %560 = vsyncpa [#allocation9], 1
    %561 = vsyncpa [#allocation12], 1
    %562 = vsyncpa [#allocation4], 1

// kernel: tpu_custom_call.1
$region0: #{tpu_custom_call.1}
  #allocation0 [shape = 'u32[]', space=smem, size = 0x4, offset = 0x4, fixed_abs, tag = 'smem constant byte address 0x4 - core index']
  #allocation1 [shape = 'u32[144,128]{1,0:T(1,128)}', space=vmem, size = 0x12000, scoped, tag = 'internal scratch']
  %s0 = inlined_call_operand.hbm [shape: bf16[16,16], index: 0, kind: input, shape index: {}]
  %s1 = inlined_call_operand.hbm [shape: f32[6,128], index: 1, kind: input, shape index: {}]
  %s2 = inlined_call_operand.hbm [shape: bf16[16,128], index: 2, kind: input, shape index: {}]
  %s3 = inlined_call_operand.hbm [shape: bf16[128,128], index: 3, kind: input, shape index: {}]
  %s4 = inlined_call_operand.hbm [shape: bf16[128,128], index: 4, kind: input, shape index: {}]
  %s5 = inlined_call_operand.hbm [shape: bf16[128,128], index: 5, kind: input, shape index: {}]
  %s6 = inlined_call_operand.hbm [shape: bf16[16,128], index: 6, kind: output, shape index: {}]
  %s7 = sld [smem:[#allocation0]]
  $region58: #{tpu_custom_call.1} parent=0
    _
  %s9 = ssub.s32 1, %s7
  %s10 = scalar_select 0, %s9, %s7
  $region1: #{tpu_custom_call.1} parent=0
    #allocation2 [shape = 'u8[4096]{0}', space=vmem, size = 0x1000, scoped, tag = 'input window, operand 0, single buffered']
    #allocation3 [shape = 's32[1]{0}', space=sflag, size = 0x4, scoped, tag = 'scoped memory for tpu_custom_call.1']
    #allocation4 [shape = 's32[1]{0}', space=sflag, size = 0x4, scoped, tag = 'scoped memory for tpu_custom_call.1']
    #allocation5 [shape = 'u8[4096]{0}', space=vmem, size = 0x1000, scoped, tag = 'input window, operand 1, single buffered']
    #allocation6 [shape = 's32[1]{0}', space=sflag, size = 0x4, scoped, tag = 'scoped memory for tpu_custom_call.1']
    #allocation7 [shape = 'u8[4096]{0}', space=vmem, size = 0x1000, scoped, tag = 'input window, operand 2, single buffered']
    #allocation8 [shape = 'u8[32768]{0}', space=vmem, size = 0x8000, scoped, tag = 'input window, operand 3, single buffered']
    #allocation9 [shape = 's32[1]{0}', space=sflag, size = 0x4, scoped, tag = 'scoped memory for tpu_custom_call.1']
    #allocation10 [shape = 'u8[32768]{0}', space=vmem, size = 0x8000, scoped, tag = 'input window, operand 4, single buffered']
    #allocation11 [shape = 'u8[32768]{0}', space=vmem, size = 0x8000, scoped, tag = 'input window, operand 5, single buffered']
    #allocation12 [shape = 's32[1]{0}', space=sflag, size = 0x4, scoped, tag = 'scoped memory for tpu_custom_call.1']
    #allocation13 [shape = 'u8[4096]{0}', space=vmem, size = 0x1000, scoped, tag = 'output window, operand 0, single buffered']
    %11 = vsyncpa [#allocation3], 0
    %12 = vsyncpa [#allocation6], 0
    %13 = vsyncpa [#allocation9], 0
    %14 = vsyncpa [#allocation12], 0
    %15 = vsyncpa [#allocation4], 0
    // Predicated region
    $region2: #{tpu_custom_call.1} parent=1 // pred_check
      _
    $region3: #{tpu_custom_call.1} parent=1 // pred_check_branch
      %17 = sbr.rel (0) target = $region5
    $region4: #{tpu_custom_call.1} parent=1 // pred_region
      %s19 = ssub.s32 128, 128
      %20 = vsyncadd [#allocation3], %s19
      %s21 = sshll.u32 [#allocation2], 4
      %s22 = int_to_ptr.vmem [resolvable:$true] %s21
      %27 = dma.hbm_to_vmem [thread:$0]  %s0, 128, %s22, [#allocation3], 64, 64, 4
    $region5: #{tpu_custom_call.1} parent=1 // pred_fallthru
      _
    // Predicated region
    $region6: #{tpu_custom_call.1} parent=1 // pred_check
      _
    $region7: #{tpu_custom_call.1} parent=1 // pred_check_branch
      %29 = sbr.rel (0) target = $region9
    $region8: #{tpu_custom_call.1} parent=1 // pred_region
      %s31 = ssub.s32 128, 128
      %32 = vsyncadd [#allocation6], %s31
      %s34 = sshll.u32 [#allocation5], 4
      %s35 = int_to_ptr.vmem [resolvable:$true] %s34
      %37 = dma.hbm_to_vmem [thread:$0]  %s1, 128, %s35, [#allocation6]
    $region9: #{tpu_custom_call.1} parent=1 // pred_fallthru
      _
    // Predicated region
    $region10: #{tpu_custom_call.1} parent=1 // pred_check
      _
    $region11: #{tpu_custom_call.1} parent=1 // pred_check_branch
      %39 = sbr.rel (0) target = $region13
    $region12: #{tpu_custom_call.1} parent=1 // pred_region
      %s41 = ssub.s32 128, 128
      %42 = vsyncadd [#allocation6], %s41
      %s43 = sshll.u32 [#allocation7], 4
      %s44 = int_to_ptr.vmem [resolvable:$true] %s43
      %49 = dma.hbm_to_vmem [thread:$0]  %s2, 128, %s44, [#allocation6], 64, 64, 4
    $region13: #{tpu_custom_call.1} parent=1 // pred_fallthru
      _
    // Predicated region
    $region14: #{tpu_custom_call.1} parent=1 // pred_check
      _
    $region15: #{tpu_custom_call.1} parent=1 // pred_check_branch
      %51 = sbr.rel (0) target = $region17
    $region16: #{tpu_custom_call.1} parent=1 // pred_region
      %s53 = ssub.s32 1024, 1024
      %54 = vsyncadd [#allocation9], %s53
      %s55 = sshll.u32 [#allocation8], 4
      %s56 = int_to_ptr.vmem [resolvable:$true] %s55
      %61 = dma.hbm_to_vmem [thread:$0]  %s3, 1024, %s56, [#allocation9], 64, 64, 4
    $region17: #{tpu_custom_call.1} parent=1 // pred_fallthru
      _
    // Predicated region
    $region18: #{tpu_custom_call.1} parent=1 // pred_check
      _
    $region19: #{tpu_custom_call.1} parent=1 // pred_check_branch
      %63 = sbr.rel (0) target = $region21
    $region20: #{tpu_custom_call.1} parent=1 // pred_region
      %s65 = ssub.s32 1024, 1024
      %66 = vsyncadd [#allocation9], %s65
      %s67 = sshll.u32 [#allocation10], 4
      %s68 = int_to_ptr.vmem [resolvable:$true] %s67
      %73 = dma.hbm_to_vmem [thread:$0]  %s4, 1024, %s68, [#allocation9], 64, 64, 4
    $region21: #{tpu_custom_call.1} parent=1 // pred_fallthru
      _
    // Predicated region
    $region22: #{tpu_custom_call.1} parent=1 // pred_check
      _
    $region23: #{tpu_custom_call.1} parent=1 // pred_check_branch
      %75 = sbr.rel (0) target = $region25
    $region24: #{tpu_custom_call.1} parent=1 // pred_region
      %s77 = ssub.s32 1024, 1024
      %78 = vsyncadd [#allocation12], %s77
      %s79 = sshll.u32 [#allocation11], 4
      %s80 = int_to_ptr.vmem [resolvable:$true] %s79
      %85 = dma.hbm_to_vmem [thread:$0]  %s5, 1024, %s80, [#allocation12], 64, 64, 4
    $region25: #{tpu_custom_call.1} parent=1 // pred_fallthru
      _
    // Predicated region
    $region26: #{tpu_custom_call.1} parent=1 // pred_check
      _
    $region27: #{tpu_custom_call.1} parent=1 // pred_check_branch
      %87 = sbr.rel (0) target = $region29
    $region28: #{tpu_custom_call.1} parent=1 // pred_region
      %88 = dma.done [#allocation3], 128
    $region29: #{tpu_custom_call.1} parent=1 // pred_fallthru
      _
    // Predicated region
    $region30: #{tpu_custom_call.1} parent=1 // pred_check
      _
    $region31: #{tpu_custom_call.1} parent=1 // pred_check_branch
      %90 = sbr.rel (0) target = $region33
    $region32: #{tpu_custom_call.1} parent=1 // pred_region
      %91 = dma.done [#allocation6], 128
    $region33: #{tpu_custom_call.1} parent=1 // pred_fallthru
      _
    // Predicated region
    $region34: #{tpu_custom_call.1} parent=1 // pred_check
      _
    $region35: #{tpu_custom_call.1} parent=1 // pred_check_branch
      %93 = sbr.rel (0) target = $region37
    $region36: #{tpu_custom_call.1} parent=1 // pred_region
      %94 = dma.done [#allocation6], 128
    $region37: #{tpu_custom_call.1} parent=1 // pred_fallthru
      _
    // Predicated region
    $region38: #{tpu_custom_call.1} parent=1 // pred_check
      _
    $region39: #{tpu_custom_call.1} parent=1 // pred_check_branch
      %96 = sbr.rel (0) target = $region41
    $region40: #{tpu_custom_call.1} parent=1 // pred_region
      %97 = dma.done [#allocation9], 1024
    $region41: #{tpu_custom_call.1} parent=1 // pred_fallthru
      _
    // Predicated region
    $region42: #{tpu_custom_call.1} parent=1 // pred_check
      _
    $region43: #{tpu_custom_call.1} parent=1 // pred_check_branch
      %99 = sbr.rel (0) target = $region45
    $region44: #{tpu_custom_call.1} parent=1 // pred_region
      %100 = dma.done [#allocation9], 1024
    $region45: #{tpu_custom_call.1} parent=1 // pred_fallthru
      _
    // Predicated region
    $region46: #{tpu_custom_call.1} parent=1 // pred_check
      _
    $region47: #{tpu_custom_call.1} parent=1 // pred_check_branch
      %102 = sbr.rel (0) target = $region49
    $region48: #{tpu_custom_call.1} parent=1 // pred_region
      %103 = dma.done [#allocation12], 1024
    $region49: #{tpu_custom_call.1} parent=1 // pred_fallthru
      _
    %v105 = vld [vmem:[#allocation2] sm:$0xf]
    %v106 = vld [vmem:[#allocation2 + $0x4] sm:$0xf]
    %v107 = vld [vmem:[#allocation7] sm:$0xf]
    %v108 = vld [vmem:[#allocation7 + $0x4] sm:$0xf]
    %v109 = vld [vmem:[#allocation5] sm:$0x1]
    %v110 = vlaneseq
    %v111 = vshrl.u32 %v110, 7
    %v112 = vsub.s32 0, %v111
    %v113 = vrot.slane %v109, %v112
    %v116 = vunpack.c.l.b16 %v105
    %v117 = vunpack.c.l.b16 %v106
    %v118 = vpack.c.b16 %v117, %v116
    %v121 = vunpack.c.l.b16 %v107
    %v122 = vunpack.c.l.b16 %v108
    %v123 = vpack.c.b16 %v122, %v121
    %vm125 = vcmask 130048
    %v127 = vsel %vm125, %v118, 0
    %129 = vmatprep.subr.bf16.mxu0 0
    %130 = vmatpush1.bf16.msra.mxu0 %v123
    %131 = vmatprep.subr.bf16.mxu0 0
    %132 = vmatpush1.bf16.msra.mxu0 0
    %133 = vmatprep.subr.bf16.mxu0 0
    %134 = vmatpush1.bf16.msra.mxu0 0
    %135 = vmatprep.subr.bf16.mxu0 0
    %136 = vmatpush1.bf16.msra.mxu0 0
    %137 = vmatprep.subr.bf16.mxu0 0
    %138 = vmatpush1.bf16.msra.mxu0 0
    %139 = vmatprep.subr.bf16.mxu0 0
    %140 = vmatpush1.bf16.msra.mxu0 0
    %141 = vmatprep.subr.bf16.mxu0 0
    %142 = vmatpush1.bf16.msra.mxu0 0
    %143 = vmatprep.subr.bf16.mxu0 0
    %144 = vmatpush1.bf16.msra.mxu0 0
    %145 = vmatprep.subr.bf16.mxu0 0
    %146 = vmatpush1.bf16.msra.mxu0 0
    %147 = vmatprep.subr.bf16.mxu0 0
    %148 = vmatpush1.bf16.msra.mxu0 0
    %149 = vmatprep.subr.bf16.mxu0 0
    %150 = vmatpush1.bf16.msra.mxu0 0
    %151 = vmatprep.subr.bf16.mxu0 0
    %152 = vmatpush1.bf16.msra.mxu0 0
    %153 = vmatprep.subr.bf16.mxu0 0
    %154 = vmatpush1.bf16.msra.mxu0 0
    %155 = vmatprep.subr.bf16.mxu0 0
    %156 = vmatpush1.bf16.msra.mxu0 0
    %157 = vmatprep.subr.bf16.mxu0 0
    %158 = vmatpush1.bf16.msra.mxu0 0
    %159 = vmatprep.subr.bf16.mxu0 0
    %160 = vmatpush1.bf16.msra.mxu0 0
    %161 = vmatprep.mubr.bf16.mxu0 0
    %162 = vmatmul.mubr.bf16.gmra.mrb[0].mxu0 %v127
    %v163 = vpop.f32.mrb[0].mxu0
    %v164 = vadd.f32 %v113, %v163
    %v165 = vpop.f32.mrb[0].mxu0
    %v166 = vpop.f32.mrb[0].mxu0
    %v167 = vadd.f32 %v113, %v166
    %v168 = vpop.f32.mrb[0].mxu0
    %169 = vdwg.mxu0
    %v170 = vpack.c.bf16 %v167, %v164
    %v171 = vld [vmem:[#allocation8] sm:$0xf]
    %v172 = vld [vmem:[#allocation8 + $0x4] sm:$0xf]
    %v173 = vld [vmem:[#allocation8 + $0x8] sm:$0xf]
    %v174 = vld [vmem:[#allocation8 + $0xc] sm:$0xf]
    %v175 = vld [vmem:[#allocation8 + $0x10] sm:$0xf]
    %v176 = vld [vmem:[#allocation8 + $0x14] sm:$0xf]
    %v177 = vld [vmem:[#allocation8 + $0x18] sm:$0xf]
    %v178 = vld [vmem:[#allocation8 + $0x1c] sm:$0xf]
    %v179 = vld [vmem:[#allocation8 + $0x20] sm:$0xf]
    %v180 = vld [vmem:[#allocation8 + $0x24] sm:$0xf]
    %v181 = vld [vmem:[#allocation8 + $0x28] sm:$0xf]
    %v182 = vld [vmem:[#allocation8 + $0x2c] sm:$0xf]
    %v183 = vld [vmem:[#allocation8 + $0x30] sm:$0xf]
    %v184 = vld [vmem:[#allocation8 + $0x34] sm:$0xf]
    %v185 = vld [vmem:[#allocation8 + $0x38] sm:$0xf]
    %v186 = vld [vmem:[#allocation8 + $0x3c] sm:$0xf]
    %v203 = vunpack.c.l.b16 %v171
    %v204 = vunpack.c.l.b16 %v172
    %v205 = vunpack.c.l.b16 %v173
    %v206 = vunpack.c.l.b16 %v174
    %v207 = vunpack.c.l.b16 %v175
    %v208 = vunpack.c.l.b16 %v176
    %v209 = vunpack.c.l.b16 %v177
    %v210 = vunpack.c.l.b16 %v178
    %v211 = vunpack.c.l.b16 %v179
    %v212 = vunpack.c.l.b16 %v180
    %v213 = vunpack.c.l.b16 %v181
    %v214 = vunpack.c.l.b16 %v182
    %v215 = vunpack.c.l.b16 %v183
    %v216 = vunpack.c.l.b16 %v184
    %v217 = vunpack.c.l.b16 %v185
    %v218 = vunpack.c.l.b16 %v186
    %v219 = vpack.c.b16 %v204, %v203
    %v220 = vpack.c.b16 %v206, %v205
    %v221 = vpack.c.b16 %v208, %v207
    %v222 = vpack.c.b16 %v210, %v209
    %v223 = vpack.c.b16 %v212, %v211
    %v224 = vpack.c.b16 %v214, %v213
    %v225 = vpack.c.b16 %v216, %v215
    %v226 = vpack.c.b16 %v218, %v217
    %235 = vmatprep.subr.bf16.mxu0 0
    %236 = vmatpush1.bf16.msra.mxu0 %v219
    %237 = vmatprep.subr.bf16.mxu0 0
    %238 = vmatpush1.bf16.msra.mxu0 %v220
    %239 = vmatprep.subr.bf16.mxu0 0
    %240 = vmatpush1.bf16.msra.mxu0 %v221
    %241 = vmatprep.subr.bf16.mxu0 0
    %242 = vmatpush1.bf16.msra.mxu0 %v222
    %243 = vmatprep.subr.bf16.mxu0 0
    %244 = vmatpush1.bf16.msra.mxu0 %v223
    %245 = vmatprep.subr.bf16.mxu0 0
    %246 = vmatpush1.bf16.msra.mxu0 %v224
    %247 = vmatprep.subr.bf16.mxu0 0
    %248 = vmatpush1.bf16.msra.mxu0 %v225
    %249 = vmatprep.subr.bf16.mxu0 0
    %250 = vmatpush1.bf16.msra.mxu0 %v226
    %251 = vmatprep.subr.bf16.mxu0 0
    %252 = vmatpush1.bf16.msra.mxu0 0
    %253 = vmatprep.subr.bf16.mxu0 0
    %254 = vmatpush1.bf16.msra.mxu0 0
    %255 = vmatprep.subr.bf16.mxu0 0
    %256 = vmatpush1.bf16.msra.mxu0 0
    %257 = vmatprep.subr.bf16.mxu0 0
    %258 = vmatpush1.bf16.msra.mxu0 0
    %259 = vmatprep.subr.bf16.mxu0 0
    %260 = vmatpush1.bf16.msra.mxu0 0
    %261 = vmatprep.subr.bf16.mxu0 0
    %262 = vmatpush1.bf16.msra.mxu0 0
    %263 = vmatprep.subr.bf16.mxu0 0
    %264 = vmatpush1.bf16.msra.mxu0 0
    %265 = vmatprep.subr.bf16.mxu0 0
    %266 = vmatpush1.bf16.msra.mxu0 0
    %267 = vmatprep.mubr.bf16.mxu0 0
    %268 = vmatmul.mubr.bf16.gmra.mrb[0].mxu0 %v170
    %v269 = vpop.f32.mrb[0].mxu0
    %v270 = vadd.f32 0.0, %v269
    %v271 = vpop.f32.mrb[0].mxu0
    %v272 = vpop.f32.mrb[0].mxu0
    %v273 = vadd.f32 0.0, %v272
    %v274 = vpop.f32.mrb[0].mxu0
    %275 = vdwg.mxu0
    %v276 = vld [vmem:[#allocation5 + $0x4] sm:$0x1]
    %v277 = vlaneseq
    %v278 = vshrl.u32 %v277, 7
    %v279 = vsub.s32 0, %v278
    %v280 = vrot.slane %v276, %v279
    %v281 = vmul.f32 %v270, %v280
    %v282 = vmul.f32 %v273, %v280
    %v283 = vld [vmem:[#allocation5 + $0x1] sm:$0x1]
    %v284 = vlaneseq
    %v285 = vshrl.u32 %v284, 7
    %v286 = vsub.s32 0, %v285
    %v287 = vrot.slane %v283, %v286
    %v288 = vadd.f32 %v281, %v287
    %v289 = vadd.f32 %v282, %v287
    %vm290 = vcmp.gt.f32.partialorder %v288, 0.0
    %vm291 = vcmp.gt.f32.partialorder %v289, 0.0
    %v292 = vmul.f32 %v288, 0.01
    %v293 = vmul.f32 %v289, 0.01
    %v294 = vsel %vm290, %v288, %v292
    %v295 = vsel %vm291, %v289, %v293
    %v296 = vpack.c.bf16 %v295, %v294
    %v297 = vld [vmem:[#allocation10] sm:$0xf]
    %v298 = vld [vmem:[#allocation10 + $0x4] sm:$0xf]
    %v299 = vld [vmem:[#allocation10 + $0x8] sm:$0xf]
    %v300 = vld [vmem:[#allocation10 + $0xc] sm:$0xf]
    %v301 = vld [vmem:[#allocation10 + $0x10] sm:$0xf]
    %v302 = vld [vmem:[#allocation10 + $0x14] sm:$0xf]
    %v303 = vld [vmem:[#allocation10 + $0x18] sm:$0xf]
    %v304 = vld [vmem:[#allocation10 + $0x1c] sm:$0xf]
    %v305 = vld [vmem:[#allocation10 + $0x20] sm:$0xf]
    %v306 = vld [vmem:[#allocation10 + $0x24] sm:$0xf]
    %v307 = vld [vmem:[#allocation10 + $0x28] sm:$0xf]
    %v308 = vld [vmem:[#allocation10 + $0x2c] sm:$0xf]
    %v309 = vld [vmem:[#allocation10 + $0x30] sm:$0xf]
    %v310 = vld [vmem:[#allocation10 + $0x34] sm:$0xf]
    %v311 = vld [vmem:[#allocation10 + $0x38] sm:$0xf]
    %v312 = vld [vmem:[#allocation10 + $0x3c] sm:$0xf]
    %v329 = vunpack.c.l.b16 %v297
    %v330 = vunpack.c.l.b16 %v298
    %v331 = vunpack.c.l.b16 %v299
    %v332 = vunpack.c.l.b16 %v300
    %v333 = vunpack.c.l.b16 %v301
    %v334 = vunpack.c.l.b16 %v302
    %v335 = vunpack.c.l.b16 %v303
    %v336 = vunpack.c.l.b16 %v304
    %v337 = vunpack.c.l.b16 %v305
    %v338 = vunpack.c.l.b16 %v306
    %v339 = vunpack.c.l.b16 %v307
    %v340 = vunpack.c.l.b16 %v308
    %v341 = vunpack.c.l.b16 %v309
    %v342 = vunpack.c.l.b16 %v310
    %v343 = vunpack.c.l.b16 %v311
    %v344 = vunpack.c.l.b16 %v312
    %v345 = vpack.c.b16 %v330, %v329
    %v346 = vpack.c.b16 %v332, %v331
    %v347 = vpack.c.b16 %v334, %v333
    %v348 = vpack.c.b16 %v336, %v335
    %v349 = vpack.c.b16 %v338, %v337
    %v350 = vpack.c.b16 %v340, %v339
    %v351 = vpack.c.b16 %v342, %v341
    %v352 = vpack.c.b16 %v344, %v343
    %361 = vmatprep.subr.bf16.mxu0 0
    %362 = vmatpush1.bf16.msra.mxu0 %v345
    %363 = vmatprep.subr.bf16.mxu0 0
    %364 = vmatpush1.bf16.msra.mxu0 %v346
    %365 = vmatprep.subr.bf16.mxu0 0
    %366 = vmatpush1.bf16.msra.mxu0 %v347
    %367 = vmatprep.subr.bf16.mxu0 0
    %368 = vmatpush1.bf16.msra.mxu0 %v348
    %369 = vmatprep.subr.bf16.mxu0 0
    %370 = vmatpush1.bf16.msra.mxu0 %v349
    %371 = vmatprep.subr.bf16.mxu0 0
    %372 = vmatpush1.bf16.msra.mxu0 %v350
    %373 = vmatprep.subr.bf16.mxu0 0
    %374 = vmatpush1.bf16.msra.mxu0 %v351
    %375 = vmatprep.subr.bf16.mxu0 0
    %376 = vmatpush1.bf16.msra.mxu0 %v352
    %377 = vmatprep.subr.bf16.mxu0 0
    %378 = vmatpush1.bf16.msra.mxu0 0
    %379 = vmatprep.subr.bf16.mxu0 0
    %380 = vmatpush1.bf16.msra.mxu0 0
    %381 = vmatprep.subr.bf16.mxu0 0
    %382 = vmatpush1.bf16.msra.mxu0 0
    %383 = vmatprep.subr.bf16.mxu0 0
    %384 = vmatpush1.bf16.msra.mxu0 0
    %385 = vmatprep.subr.bf16.mxu0 0
    %386 = vmatpush1.bf16.msra.mxu0 0
    %387 = vmatprep.subr.bf16.mxu0 0
    %388 = vmatpush1.bf16.msra.mxu0 0
    %389 = vmatprep.subr.bf16.mxu0 0
    %390 = vmatpush1.bf16.msra.mxu0 0
    %391 = vmatprep.subr.bf16.mxu0 0
    %392 = vmatpush1.bf16.msra.mxu0 0
    %393 = vmatprep.mubr.bf16.mxu0 0
    %394 = vmatmul.mubr.bf16.gmra.mrb[0].mxu0 %v296
    %v395 = vpop.f32.mrb[0].mxu0
    %v396 = vadd.f32 0.0, %v395
    %v397 = vpop.f32.mrb[0].mxu0
    %v398 = vpop.f32.mrb[0].mxu0
    %v399 = vadd.f32 0.0, %v398
    %v400 = vpop.f32.mrb[0].mxu0
    %401 = vdwg.mxu0
    %v402 = vld [vmem:[#allocation5 + $0x5] sm:$0x1]
    %v403 = vlaneseq
    %v404 = vshrl.u32 %v403, 7
    %v405 = vsub.s32 0, %v404
    %v406 = vrot.slane %v402, %v405
    %v407 = vmul.f32 %v396, %v406
    %v408 = vmul.f32 %v399, %v406
    %v409 = vld [vmem:[#allocation5 + $0x2] sm:$0x1]
    %v410 = vlaneseq
    %v411 = vshrl.u32 %v410, 7
    %v412 = vsub.s32 0, %v411
    %v413 = vrot.slane %v409, %v412
    %v414 = vadd.f32 %v407, %v413
    %v415 = vadd.f32 %v408, %v413
    %vm416 = vcmp.gt.f32.partialorder %v414, 0.0
    %vm417 = vcmp.gt.f32.partialorder %v415, 0.0
    %v418 = vmul.f32 %v414, 0.01
    %v419 = vmul.f32 %v415, 0.01
    %v420 = vsel %vm416, %v414, %v418
    %v421 = vsel %vm417, %v415, %v419
    %v422 = vpack.c.bf16 %v421, %v420
    %v423 = vld [vmem:[#allocation11] sm:$0xf]
    %v424 = vld [vmem:[#allocation11 + $0x4] sm:$0xf]
    %v425 = vld [vmem:[#allocation11 + $0x8] sm:$0xf]
    %v426 = vld [vmem:[#allocation11 + $0xc] sm:$0xf]
    %v427 = vld [vmem:[#allocation11 + $0x10] sm:$0xf]
    %v428 = vld [vmem:[#allocation11 + $0x14] sm:$0xf]
    %v429 = vld [vmem:[#allocation11 + $0x18] sm:$0xf]
    %v430 = vld [vmem:[#allocation11 + $0x1c] sm:$0xf]
    %v431 = vld [vmem:[#allocation11 + $0x20] sm:$0xf]
    %v432 = vld [vmem:[#allocation11 + $0x24] sm:$0xf]
    %v433 = vld [vmem:[#allocation11 + $0x28] sm:$0xf]
    %v434 = vld [vmem:[#allocation11 + $0x2c] sm:$0xf]
    %v435 = vld [vmem:[#allocation11 + $0x30] sm:$0xf]
    %v436 = vld [vmem:[#allocation11 + $0x34] sm:$0xf]
    %v437 = vld [vmem:[#allocation11 + $0x38] sm:$0xf]
    %v438 = vld [vmem:[#allocation11 + $0x3c] sm:$0xf]
    %v439 = vld [vmem:[#allocation5 + $0x3] sm:$0x1]
    %v440 = vlaneseq
    %v441 = vshrl.u32 %v440, 7
    %v442 = vsub.s32 0, %v441
    %v443 = vrot.slane %v439, %v442
    %v460 = vunpack.c.l.b16 %v423
    %v461 = vunpack.c.l.b16 %v424
    %v462 = vunpack.c.l.b16 %v425
    %v463 = vunpack.c.l.b16 %v426
    %v464 = vunpack.c.l.b16 %v427
    %v465 = vunpack.c.l.b16 %v428
    %v466 = vunpack.c.l.b16 %v429
    %v467 = vunpack.c.l.b16 %v430
    %v468 = vunpack.c.l.b16 %v431
    %v469 = vunpack.c.l.b16 %v432
    %v470 = vunpack.c.l.b16 %v433
    %v471 = vunpack.c.l.b16 %v434
    %v472 = vunpack.c.l.b16 %v435
    %v473 = vunpack.c.l.b16 %v436
    %v474 = vunpack.c.l.b16 %v437
    %v475 = vunpack.c.l.b16 %v438
    %v476 = vpack.c.b16 %v461, %v460
    %v477 = vpack.c.b16 %v463, %v462
    %v478 = vpack.c.b16 %v465, %v464
    %v479 = vpack.c.b16 %v467, %v466
    %v480 = vpack.c.b16 %v469, %v468
    %v481 = vpack.c.b16 %v471, %v470
    %v482 = vpack.c.b16 %v473, %v472
    %v483 = vpack.c.b16 %v475, %v474
    %492 = vmatprep.subr.bf16.mxu0 0
    %493 = vmatpush1.bf16.msra.mxu0 %v476
    %494 = vmatprep.subr.bf16.mxu0 0
    %495 = vmatpush1.bf16.msra.mxu0 %v477
    %496 = vmatprep.subr.bf16.mxu0 0
    %497 = vmatpush1.bf16.msra.mxu0 %v478
    %498 = vmatprep.subr.bf16.mxu0 0
    %499 = vmatpush1.bf16.msra.mxu0 %v479
    %500 = vmatprep.subr.bf16.mxu0 0
    %501 = vmatpush1.bf16.msra.mxu0 %v480
    %502 = vmatprep.subr.bf16.mxu0 0
    %503 = vmatpush1.bf16.msra.mxu0 %v481
    %504 = vmatprep.subr.bf16.mxu0 0
    %505 = vmatpush1.bf16.msra.mxu0 %v482
    %506 = vmatprep.subr.bf16.mxu0 0
    %507 = vmatpush1.bf16.msra.mxu0 %v483
    %508 = vmatprep.subr.bf16.mxu0 0
    %509 = vmatpush1.bf16.msra.mxu0 0
    %510 = vmatprep.subr.bf16.mxu0 0
    %511 = vmatpush1.bf16.msra.mxu0 0
    %512 = vmatprep.subr.bf16.mxu0 0
    %513 = vmatpush1.bf16.msra.mxu0 0
    %514 = vmatprep.subr.bf16.mxu0 0
    %515 = vmatpush1.bf16.msra.mxu0 0
    %516 = vmatprep.subr.bf16.mxu0 0
    %517 = vmatpush1.bf16.msra.mxu0 0
    %518 = vmatprep.subr.bf16.mxu0 0
    %519 = vmatpush1.bf16.msra.mxu0 0
    %520 = vmatprep.subr.bf16.mxu0 0
    %521 = vmatpush1.bf16.msra.mxu0 0
    %522 = vmatprep.subr.bf16.mxu0 0
    %523 = vmatpush1.bf16.msra.mxu0 0
    %524 = vmatprep.mubr.bf16.mxu0 0
    %525 = vmatmul.mubr.bf16.gmra.mrb[0].mxu0 %v422
    %v526 = vpop.f32.mrb[0].mxu0
    %v527 = vadd.f32 %v443, %v526
    %v528 = vpop.f32.mrb[0].mxu0
    %v529 = vpop.f32.mrb[0].mxu0
    %v530 = vadd.f32 %v443, %v529
    %v531 = vpop.f32.mrb[0].mxu0
    %532 = vdwg.mxu0
    %v533 = vpack.c.bf16 %v530, %v527
    %v535 = vunpack.c.l.b16 %v533
    %v536 = vunpack.c.h.b16 %v533
    %v537 = vpack.c.b16 %v535, %v535
    %v538 = vpack.c.b16 %v536, %v536
    %541 = vst [vmem:[#allocation13] sm:$0xf] %v537
    %542 = vst [vmem:[#allocation13 + $0x4] sm:$0xf] %v538
    // Predicated region
    $region50: #{tpu_custom_call.1} parent=1 // pred_check
      _
    $region51: #{tpu_custom_call.1} parent=1 // pred_check_branch
      %544 = sbr.rel (0) target = $region53
    $region52: #{tpu_custom_call.1} parent=1 // pred_region
      %s546 = ssub.s32 128, 128
      %547 = vsyncadd [#allocation4], %s546
      %s548 = sshll.u32 [#allocation13], 4
      %s549 = int_to_ptr.vmem [resolvable:$true] %s548
      %554 = dma.vmem_to_hbm [thread:$0]  %s549, 128, %s6, [#allocation4], 64, 64, 4
    $region53: #{tpu_custom_call.1} parent=1 // pred_fallthru
      _
    // Predicated region
    $region54: #{tpu_custom_call.1} parent=1 // pred_check
      _
    $region55: #{tpu_custom_call.1} parent=1 // pred_check_branch
      %556 = sbr.rel (0) target = $region57
    $region56: #{tpu_custom_call.1} parent=1 // pred_region
      %557 = dma.done [#allocation4], 128
    $region57: #{tpu_custom_call.1} parent=1 // pred_fallthru
      _
    %558 = vsyncpa [#allocation3], 1
    %559 = vsyncpa [#allocation6], 1
    %560 = vsyncpa [#allocation9], 1
    %561 = vsyncpa [#allocation12], 1
    %562 = vsyncpa [#allocation4], 1

</llo_original>
